<compile_context>
chip_gen: v6e
topology: v6e:2x2x1
jax: 0.10.0
libtpu: 0.0.40
codegen_flags: <defaults>
</compile_context>

<pallas_src>
import math

import jax
import jax.numpy as jnp
from jax.experimental import pallas as pl
from jax.experimental.pallas import tpu as pltpu


def _round_up(x, m):
    return ((x + m - 1) // m) * m


# ---------------------------------------------------------------------------
# Kernels
# ---------------------------------------------------------------------------

def _linear_resident_kernel(x_ref, w_ref, b_ref, o_ref):
    # x: [TM, K], w: [K, Np] (pre-transposed in the wrapper), b: [1, Np],
    # o: [TM, Np].  Canonical (M,K)x(K,N) feeds the MXU with no relayout.
    acc = jnp.dot(x_ref[...], w_ref[...], preferred_element_type=jnp.float32)
    o_ref[...] = (acc + b_ref[...].astype(jnp.float32)).astype(o_ref.dtype)


def _linear_tiled_kernel(x_ref, w_ref, b_ref, o_ref, acc_ref):
    # Grid = (M, N, K); K is the innermost reduction axis ("arbitrary").
    kk = pl.program_id(2)

    @pl.when(kk == 0)
    def _init():
        acc_ref[...] = jnp.zeros_like(acc_ref)

    acc_ref[...] += jnp.dot(x_ref[...], w_ref[...],
                            preferred_element_type=jnp.float32)

    @pl.when(kk == pl.num_programs(2) - 1)
    def _finalize():
        o_ref[...] = (acc_ref[...] + b_ref[...].astype(jnp.float32)
                      ).astype(o_ref.dtype)


# ---------------------------------------------------------------------------
# VMEM budgeting / tile selection
# ---------------------------------------------------------------------------

def _vmem_budget_and_limit():
    """Per-generation VMEM budget for block sizing + scoped limit for Mosaic."""
    cap = 64 << 20  # conservative fallback == v7x per-TC VMEM
    try:
        info = pltpu.get_tpu_info()
        cap = int(getattr(info, "vmem_capacity_bytes", cap)) or cap
    except Exception:
        pass
    # Blocks sized against ~3/4 of physical (96 MiB v5e/v6e, 48 MiB v7x);
    # the scoped limit gets extra headroom for compiler-internal scratch.
    budget = min((cap * 3) // 4, 96 << 20)
    vmem_limit = min((cap * 9) // 10, budget + (32 << 20), 127 << 20)
    return budget, vmem_limit


def _sublane(itemsize):
    # 8 rows for 4-byte, 16 for 2-byte, 32 for 1-byte dtypes (sublane packing).
    return max(8, 32 // max(itemsize, 1))


def _choose_tile_m_resident(m_rows, k_eff, n_pad, itemsize, budget, sub,
                            weight_bufs):
    k_lane = _round_up(k_eff, 128)        # x tile is lane-padded inside VMEM
    fixed = weight_bufs * (_round_up(k_eff, sub) * n_pad + n_pad) * itemsize
    per_row = 2 * (k_lane + n_pad) * itemsize     # streamed x + out, 2 buffers
    tm = (budget - fixed) // max(per_row, 1)
    tm = max(sub, min(int(tm), 1024))
    tm = (tm // sub) * sub
    tm = min(tm, _round_up(m_rows, sub))
    return max(tm, sub)


def _choose_tile_m_tiled(m_rows, k_blk, n_blk, itemsize, budget, sub):
    fixed = 2 * (k_blk * n_blk + n_blk) * itemsize          # W / bias blocks
    per_row = 2 * (k_blk + n_blk) * itemsize + 4 * n_blk    # x + out + f32 acc
    tm = (budget - fixed) // max(per_row, 1)
    tm = max(sub, min(int(tm), 1024))
    tm = (tm // sub) * sub
    tm = min(tm, _round_up(m_rows, sub))
    return max(tm, sub)


# ---------------------------------------------------------------------------
# pallas_call wrappers
# ---------------------------------------------------------------------------

def _resident_call(x2d, w_p, b_p, n_pad, itemsize, budget, vmem_limit, sub,
                   single_buffer_weight):
    """Weight resident in VMEM; grid streams x / out tiles over M only."""
    m_rows, k_eff = x2d.shape
    tm = _choose_tile_m_resident(
        m_rows, k_eff, n_pad, itemsize, budget, sub,
        weight_bufs=1 if single_buffer_weight else 2)
    grid_m = pl.cdiv(m_rows, tm)
    resident = pl.Buffered(1) if single_buffer_weight else None
    # TODO(synk): on v7x, sweep pl.Buffered(3) on the streamed x / out specs
    # once the single-buffered weight frees the VMEM.
    return pl.pallas_call(
        _linear_resident_kernel,
        out_shape=jax.ShapeDtypeStruct((m_rows, n_pad), x2d.dtype),
        grid=(grid_m,),
        in_specs=[
            pl.BlockSpec((tm, k_eff), lambda i: (i, 0)),                 # x
            pl.BlockSpec((k_eff, n_pad), lambda i: (0, 0),
                         pipeline_mode=resident),                        # W^T
            pl.BlockSpec((1, n_pad), lambda i: (0, 0),
                         pipeline_mode=resident),                        # bias
        ],
        out_specs=pl.BlockSpec((tm, n_pad), lambda i: (i, 0)),
        compiler_params=pltpu.CompilerParams(
            dimension_semantics=("parallel",),
            vmem_limit_bytes=vmem_limit),
        cost_estimate=pl.CostEstimate(
            flops=2 * m_rows * k_eff * n_pad,
            transcendentals=0,
            bytes_accessed=(m_rows * k_eff + k_eff * n_pad + n_pad
                            + m_rows * n_pad) * itemsize),
    )(x2d, w_p, b_p)


def _tiled_call(x2d, weight, bias, n_pad, pad_m, itemsize, budget, vmem_limit,
                sub):
    """Large-weight path: tile N (parallel) and K (reduction + f32 acc)."""
    m, k = x2d.shape
    n = weight.shape[0]

    # Balanced K / N blocks: multiples of 128 (v5e MXU) and <= 512 (2x the
    # v6e/v7x 256-wide MXU), chosen so the last block is (nearly) full.
    k_pad = _round_up(k, 128)
    grid_k = pl.cdiv(k_pad, 512)
    k_blk = _round_up(pl.cdiv(k_pad, grid_k), 128)
    k_full = k_blk * grid_k               # zero K-pad is required: K is reduced

    grid_n0 = pl.cdiv(n_pad, 512)
    n_blk = _round_up(pl.cdiv(n_pad, grid_n0), 128)
    grid_n = pl.cdiv(n_pad, n_blk)        # ragged last N block is fine

    if pad_m or k_full != k:
        x2d = jnp.pad(x2d, ((0, pad_m), (0, k_full - k)))
    w_p = jnp.pad(weight.T, ((0, k_full - k), (0, n_pad - n)))
    b_p = jnp.pad(bias, (0, n_pad - n)).reshape(1, n_pad)

    m_rows = x2d.shape[0]
    tm = _choose_tile_m_tiled(m_rows, k_blk, n_blk, itemsize, budget, sub)
    grid_m = pl.cdiv(m_rows, tm)

    return pl.pallas_call(
        _linear_tiled_kernel,
        out_shape=jax.ShapeDtypeStruct((m_rows, n_pad), x2d.dtype),
        grid=(grid_m, grid_n, grid_k),
        in_specs=[
            pl.BlockSpec((tm, k_blk), lambda i, j, l: (i, l)),     # x
            pl.BlockSpec((k_blk, n_blk), lambda i, j, l: (l, j)),  # W^T
            pl.BlockSpec((1, n_blk), lambda i, j, l: (0, j)),      # bias
        ],
        out_specs=pl.BlockSpec((tm, n_blk), lambda i, j, l: (i, j)),
        scratch_shapes=[pltpu.VMEM((tm, n_blk), jnp.float32)],
        compiler_params=pltpu.CompilerParams(
            dimension_semantics=("parallel", "parallel", "arbitrary"),
            vmem_limit_bytes=vmem_limit),
        cost_estimate=pl.CostEstimate(
            flops=2 * m_rows * k_full * n_pad,
            transcendentals=0,
            bytes_accessed=(m_rows * k_full * grid_n + k_full * n_pad
                            + n_pad + m_rows * n_pad) * itemsize),
    )(x2d, w_p, b_p)


# ---------------------------------------------------------------------------
# Public wrapper: y = x @ weight.T + bias  (PyTorch nn.Linear semantics)
# ---------------------------------------------------------------------------

def input_embedding(x, weight, bias):
    """x: [..., input_dim], weight: [d_model, input_dim], bias: [d_model]."""
    *lead, k = x.shape
    n = weight.shape[0]
    m = 1
    for d in lead:
        m *= d

    itemsize = jnp.dtype(x.dtype).itemsize
    sub = _sublane(itemsize)
    n_pad = _round_up(n, 128)             # lane-dense output (no masked vst)
    budget, vmem_limit = _vmem_budget_and_limit()

    x2d = x.reshape(m, k)
    m_sub = _round_up(m, sub)
    pad_m = m_sub - m                     # usually 0 -> no extra HBM pass

    # Skip the K lane-pad when it would blow up x traffic (tiny input_dim);
    # a block last-dim equal to the full array dim is always legal.
    k_eff = k if (k < 64 or k % 128 == 0) else _round_up(k, 128)

    resident_w_bytes = (_round_up(k_eff, sub) * n_pad + n_pad) * itemsize
    if 2 * resident_w_bytes <= budget // 2:
        # --- resident-weight fast path -----------------------------------
        if pad_m or k_eff != k:
            x2d = jnp.pad(x2d, ((0, pad_m), (0, k_eff - k)))
        # Single fused HBM pass: transpose to [K, Np] + pad N to lane width.
        w_p = jnp.pad(weight.T, ((0, k_eff - k), (0, n_pad - n)))
        b_p = jnp.pad(bias, (0, n_pad - n)).reshape(1, n_pad)
        try:
            out = _resident_call(x2d, w_p, b_p, n_pad, itemsize, budget,
                                 vmem_limit, sub, single_buffer_weight=True)
        except Exception:
            # pl.Buffered(1) may not be honoured by every jax version for the
            # top-level grid pipeline; retry with default double buffering
            # (tile size is re-derived against the 2x weight footprint).
            out = _resident_call(x2d, w_p, b_p, n_pad, itemsize, budget,
                                 vmem_limit, sub, single_buffer_weight=False)
    else:
        # --- large-weight path: tile N (parallel) and K (reduction) ------
        out = _tiled_call(x2d, weight, bias, n_pad, pad_m, itemsize, budget,
                          vmem_limit, sub)

    if pad_m:
        out = out[:m]
    if n_pad != n:
        out = out[:, :n]
    return out.reshape(*lead, n)


# ---------------------------------------------------------------------------
# Demo / self-test
# ---------------------------------------------------------------------------

if __name__ == "__main__":
    input_dim = 4
    d_model = 32
    batch, seq = 2, 8

    key = jax.random.PRNGKey(0)
    kx, kw, kb = jax.random.split(key, 3)

    # Deterministic init mirroring nn.Linear's uniform(-1/sqrt(k), 1/sqrt(k)).
    bound = 1.0 / math.sqrt(input_dim)
    weight = jax.random.uniform(kw, (d_model, input_dim), jnp.float32,
                                minval=-bound, maxval=bound)
    bias = jax.random.uniform(kb, (d_model,), jnp.float32,
                              minval=-bound, maxval=bound)
    x = jax.random.normal(kx, (batch, seq, input_dim), jnp.float32)

    y = input_embedding(x, weight, bias)
    jax.block_until_ready(y)

    y_ref = x @ weight.T + bias
    assert y.shape == (batch, seq, d_model)
    assert jnp.allclose(y, y_ref, atol=1e-5, rtol=1e-5)

    # Also exercise the tiled (large-weight) path once at small shapes.
    budget, vmem_limit = _vmem_budget_and_limit()
    y_tiled = _tiled_call(x.reshape(batch * seq, input_dim), weight, bias,
                          n_pad=_round_up(d_model, 128), pad_m=0,
                          itemsize=4, budget=budget, vmem_limit=vmem_limit,
                          sub=8)
    y_tiled = y_tiled[:, :d_model].reshape(batch, seq, d_model)
    jax.block_until_ready(y_tiled)
    assert jnp.allclose(y_tiled, y_ref, atol=1e-5, rtol=1e-5)

    print("KERNEL_OK")
</pallas_src>

<mosaic_0001>
module attributes {stable_mosaic.version = 11 : i64} {
  func.func @_linear_resident_kernel(%arg0: i32, %arg1: memref<16x4xf32, #tpu.memory_space<vmem>>, %arg2: memref<4x128xf32, #tpu.memory_space<vmem>>, %arg3: memref<1x128xf32, #tpu.memory_space<vmem>>, %arg4: memref<16x128xf32, #tpu.memory_space<vmem>>) attributes {dimension_semantics = [#tpu.dimension_semantics<parallel>], iteration_bounds = array<i64: 1>, scalar_prefetch = 0 : i64, scratch_operands = 0 : i64, tpu.core_type = #tpu.core_type<tc>, window_params = [{transform_indices = @transform_0, window_bounds = array<i64: 16, 4>}, {pipeline_mode = #tpu.pipeline_mode<synchronous>, transform_indices = @transform_1, window_bounds = array<i64: 4, 128>}, {pipeline_mode = #tpu.pipeline_mode<synchronous>, transform_indices = @transform_2, window_bounds = array<i64: 1, 128>}, {transform_indices = @transform_3, window_bounds = array<i64: 16, 128>}]} {
    %c0 = arith.constant 0 : index
    %c0_0 = arith.constant 0 : index
    %0 = vector.load %arg1[%c0, %c0_0] : memref<16x4xf32, #tpu.memory_space<vmem>>, vector<16x4xf32>
    %c0_1 = arith.constant 0 : index
    %c0_2 = arith.constant 0 : index
    %1 = vector.load %arg2[%c0_1, %c0_2] : memref<4x128xf32, #tpu.memory_space<vmem>>, vector<4x128xf32>
    %cst = arith.constant dense<0.000000e+00> : vector<16x128xf32>
    %2 = tpu.matmul %0, %1, %cst {dimension_numbers = #tpu.dot_dimension_numbers<[1], [0], [0], [1], [0, 0, 1, 1], [], []>} : vector<16x4xf32>, vector<4x128xf32>, vector<16x128xf32> -> vector<16x128xf32>
    %c0_3 = arith.constant 0 : index
    %c0_4 = arith.constant 0 : index
    %3 = vector.load %arg3[%c0_3, %c0_4] : memref<1x128xf32, #tpu.memory_space<vmem>>, vector<1x128xf32>
    %4 = vector.broadcast %3 : vector<1x128xf32> to vector<16x128xf32>
    %5 = arith.addf %2, %4 : vector<16x128xf32>
    %c0_5 = arith.constant 0 : index
    %c0_6 = arith.constant 0 : index
    %6 = vector.load %arg4[%c0_5, %c0_6] : memref<16x128xf32, #tpu.memory_space<vmem>>, vector<16x128xf32>
    tpu.vector_store %arg4[%c0_5, %c0_6], %5 {strides = array<i32>} : memref<16x128xf32, #tpu.memory_space<vmem>>, vector<16x128xf32>,
    return
  }
  func.func @transform_0(%arg0: i32) -> (i32, i32) {
    %c0_i32 = arith.constant 0 : i32
    %c0_i32_0 = arith.constant 0 : i32
    return %arg0, %c0_i32 : i32, i32
  }
  func.func @transform_1(%arg0: i32) -> (i32, i32) {
    %c0_i32 = arith.constant 0 : i32
    %c0_i32_0 = arith.constant 0 : i32
    %c0_i32_1 = arith.constant 0 : i32
    return %c0_i32, %c0_i32_0 : i32, i32
  }
  func.func @transform_2(%arg0: i32) -> (i32, i32) {
    %c0_i32 = arith.constant 0 : i32
    %c0_i32_0 = arith.constant 0 : i32
    %c0_i32_1 = arith.constant 0 : i32
    return %c0_i32, %c0_i32_0 : i32, i32
  }
  func.func @transform_3(%arg0: i32) -> (i32, i32) {
    %c0_i32 = arith.constant 0 : i32
    %c0_i32_0 = arith.constant 0 : i32
    return %arg0, %c0_i32 : i32, i32
  }
}

module attributes {stable_mosaic.version = 11 : i64} {
  func.func @_linear_resident_kernel(%arg0: i32, %arg1: memref<16x4xf32, #tpu.memory_space<vmem>>, %arg2: memref<4x128xf32, #tpu.memory_space<vmem>>, %arg3: memref<1x128xf32, #tpu.memory_space<vmem>>, %arg4: memref<16x128xf32, #tpu.memory_space<vmem>>) attributes {dimension_semantics = [#tpu.dimension_semantics<parallel>], iteration_bounds = array<i64: 1>, scalar_prefetch = 0 : i64, scratch_operands = 0 : i64, tpu.core_type = #tpu.core_type<tc>, window_params = [{transform_indices = @transform_0, window_bounds = array<i64: 16, 4>}, {pipeline_mode = #tpu.pipeline_mode<synchronous>, transform_indices = @transform_1, window_bounds = array<i64: 4, 128>}, {pipeline_mode = #tpu.pipeline_mode<synchronous>, transform_indices = @transform_2, window_bounds = array<i64: 1, 128>}, {transform_indices = @transform_3, window_bounds = array<i64: 16, 128>}]} {
    %c0 = arith.constant 0 : index
    %c0_0 = arith.constant 0 : index
    %0 = vector.load %arg1[%c0, %c0_0] : memref<16x4xf32, #tpu.memory_space<vmem>>, vector<16x4xf32>
    %c0_1 = arith.constant 0 : index
    %c0_2 = arith.constant 0 : index
    %1 = vector.load %arg2[%c0_1, %c0_2] : memref<4x128xf32, #tpu.memory_space<vmem>>, vector<4x128xf32>
    %cst = arith.constant dense<0.000000e+00> : vector<16x128xf32>
    %2 = tpu.matmul %0, %1, %cst {dimension_numbers = #tpu.dot_dimension_numbers<[1], [0], [0], [1], [0, 0, 1, 1], [], []>} : vector<16x4xf32>, vector<4x128xf32>, vector<16x128xf32> -> vector<16x128xf32>
    %c0_3 = arith.constant 0 : index
    %c0_4 = arith.constant 0 : index
    %3 = vector.load %arg3[%c0_3, %c0_4] : memref<1x128xf32, #tpu.memory_space<vmem>>, vector<1x128xf32>
    %4 = vector.broadcast %3 : vector<1x128xf32> to vector<16x128xf32>
    %5 = arith.addf %2, %4 : vector<16x128xf32>
    %c0_5 = arith.constant 0 : index
    %c0_6 = arith.constant 0 : index
    %6 = vector.load %arg4[%c0_5, %c0_6] : memref<16x128xf32, #tpu.memory_space<vmem>>, vector<16x128xf32>
    tpu.vector_store %arg4[%c0_5, %c0_6], %5 {strides = array<i32>} : memref<16x128xf32, #tpu.memory_space<vmem>>, vector<16x128xf32>,
    return
  }
  func.func @transform_0(%arg0: i32) -> (i32, i32) {
    %c0_i32 = arith.constant 0 : i32
    %c0_i32_0 = arith.constant 0 : i32
    return %arg0, %c0_i32 : i32, i32
  }
  func.func @transform_1(%arg0: i32) -> (i32, i32) {
    %c0_i32 = arith.constant 0 : i32
    %c0_i32_0 = arith.constant 0 : i32
    %c0_i32_1 = arith.constant 0 : i32
    return %c0_i32, %c0_i32_0 : i32, i32
  }
  func.func @transform_2(%arg0: i32) -> (i32, i32) {
    %c0_i32 = arith.constant 0 : i32
    %c0_i32_0 = arith.constant 0 : i32
    %c0_i32_1 = arith.constant 0 : i32
    return %c0_i32, %c0_i32_0 : i32, i32
  }
  func.func @transform_3(%arg0: i32) -> (i32, i32) {
    %c0_i32 = arith.constant 0 : i32
    %c0_i32_0 = arith.constant 0 : i32
    return %arg0, %c0_i32 : i32, i32
  }
}

</mosaic_0001>

<llo_original>
// kernel: tpu_custom_call.1
$region0: #{tpu_custom_call.1}
  #allocation0 [shape = 'u32[]', space=smem, size = 0x4, offset = 0x4, fixed_abs, tag = 'smem constant byte address 0x4 - core index']
  #allocation1 [shape = 'u32[144,128]{1,0:T(1,128)}', space=vmem, size = 0x12000, scoped, tag = 'internal scratch']
  %s0 = inlined_call_operand.vmem [shape: f32[16,4], index: 0, kind: input, shape index: {}]
  %s1 = inlined_call_operand.vmem [shape: f32[4,128], index: 1, kind: input, shape index: {}]
  %s2 = inlined_call_operand.vmem [shape: f32[1,128], index: 2, kind: input, shape index: {}]
  %s3 = inlined_call_operand.hbm [shape: f32[16,128], index: 3, kind: output, shape index: {}]
  %s4 = sld [smem:[#allocation0]]
  $region22: #{tpu_custom_call.1} parent=0
    _
  %s6 = ssub.s32 1, %s4
  %s7 = scalar_select 0, %s6, %s4
  $region1: #{tpu_custom_call.1} parent=0
    #allocation2 [shape = 'u8[8192]{0}', space=vmem, size = 0x2000, scoped, tag = 'output window, operand 0, single buffered']
    #allocation3 [shape = 's32[1]{0}', space=sflag, size = 0x4, scoped, tag = 'scoped memory for tpu_custom_call.1']
    %8 = vsyncpa [#allocation3], 0
    // Predicated region
    $region2: #{tpu_custom_call.1} parent=1 // pred_check
      _
    $region3: #{tpu_custom_call.1} parent=1 // pred_check_branch
      %10 = sbr.rel (0) target = $region5
    $region4: #{tpu_custom_call.1} parent=1 // pred_region
      _
    $region5: #{tpu_custom_call.1} parent=1 // pred_fallthru
      _
    // Predicated region
    $region6: #{tpu_custom_call.1} parent=1 // pred_check
      _
    $region7: #{tpu_custom_call.1} parent=1 // pred_check_branch
      %12 = sbr.rel (0) target = $region9
    $region8: #{tpu_custom_call.1} parent=1 // pred_region
      _
    $region9: #{tpu_custom_call.1} parent=1 // pred_fallthru
      _
    // Predicated region
    $region10: #{tpu_custom_call.1} parent=1 // pred_check
      _
    $region11: #{tpu_custom_call.1} parent=1 // pred_check_branch
      %14 = sbr.rel (0) target = $region13
    $region12: #{tpu_custom_call.1} parent=1 // pred_region
      _
    $region13: #{tpu_custom_call.1} parent=1 // pred_fallthru
      _
    %v15 = vld [vmem:[%s0] sm:$0xff]
    %v16 = vld [vmem:[%s0 + $0x8] sm:$0xff]
    %v17 = vld [vmem:[%s1] sm:$0xf]
    %v18 = vld [vmem:[%s2] sm:$0x1]
    %v20 = vlaneseq
    %v21 = vshrl.u32 %v20, 7
    %v22 = vsub.s32 0, %v21
    %v23 = vrot.slane %v18, %v22
    %vm25 = vcmask 31744
    %v27 = vsel %vm25, %v15, 0
    %v30 = vsel %vm25, %v16, 0
    %vm32 = vcmask 1043456
    %v34 = vsel %vm32, %v17, 0
    %36 = vmatprep.subr.mxu0 0.0
    %37 = vmatpush1.msra.mxu0 0.0
    %38 = vmatprep.subr.mxu0 0.0
    %39 = vmatpush1.msra.mxu0 0.0
    %40 = vmatprep.subr.mxu0 0.0
    %41 = vmatpush1.msra.mxu0 0.0
    %42 = vmatprep.subr.mxu0 0.0
    %43 = vmatpush1.msra.mxu0 0.0
    %44 = vmatprep.subr.mxu0 0.0
    %45 = vmatpush1.msra.mxu0 0.0
    %46 = vmatprep.subr.mxu0 0.0
    %47 = vmatpush1.msra.mxu0 0.0
    %48 = vmatprep.subr.mxu0 0.0
    %49 = vmatpush1.msra.mxu0 0.0
    %50 = vmatprep.subr.mxu0 0.0
    %51 = vmatpush1.msra.mxu0 0.0
    %52 = vmatprep.subr.mxu0 0.0
    %53 = vmatpush1.msra.mxu0 0.0
    %54 = vmatprep.subr.mxu0 0.0
    %55 = vmatpush1.msra.mxu0 0.0
    %56 = vmatprep.subr.mxu0 0.0
    %57 = vmatpush1.msra.mxu0 0.0
    %58 = vmatprep.subr.mxu0 0.0
    %59 = vmatpush1.msra.mxu0 0.0
    %60 = vmatprep.subr.mxu0 0.0
    %61 = vmatpush1.msra.mxu0 0.0
    %62 = vmatprep.subr.mxu0 0.0
    %63 = vmatpush1.msra.mxu0 0.0
    %64 = vmatprep.subr.mxu0 0.0
    %65 = vmatpush1.msra.mxu0 0.0
    %66 = vmatprep.subr.mxu0 0.0
    %67 = vmatpush1.msra.mxu0 %v34
    %68 = vmatprep.subr.mxu0 0.0
    %69 = vmatpush2.msra.mxu0 0.0
    %70 = vmatprep.subr.mxu0 0.0
    %71 = vmatpush2.msra.mxu0 0.0
    %72 = vmatprep.subr.mxu0 0.0
    %73 = vmatpush2.msra.mxu0 0.0
    %74 = vmatprep.subr.mxu0 0.0
    %75 = vmatpush2.msra.mxu0 0.0
    %76 = vmatprep.subr.mxu0 0.0
    %77 = vmatpush2.msra.mxu0 0.0
    %78 = vmatprep.subr.mxu0 0.0
    %79 = vmatpush2.msra.mxu0 0.0
    %80 = vmatprep.subr.mxu0 0.0
    %81 = vmatpush2.msra.mxu0 0.0
    %82 = vmatprep.subr.mxu0 0.0
    %83 = vmatpush2.msra.mxu0 0.0
    %84 = vmatprep.subr.mxu0 0.0
    %85 = vmatpush2.msra.mxu0 0.0
    %86 = vmatprep.subr.mxu0 0.0
    %87 = vmatpush2.msra.mxu0 0.0
    %88 = vmatprep.subr.mxu0 0.0
    %89 = vmatpush2.msra.mxu0 0.0
    %90 = vmatprep.subr.mxu0 0.0
    %91 = vmatpush2.msra.mxu0 0.0
    %92 = vmatprep.subr.mxu0 0.0
    %93 = vmatpush2.msra.mxu0 0.0
    %94 = vmatprep.subr.mxu0 0.0
    %95 = vmatpush2.msra.mxu0 0.0
    %96 = vmatprep.subr.mxu0 0.0
    %97 = vmatpush2.msra.mxu0 0.0
    %98 = vmatprep.subr.mxu0 0.0
    %99 = vmatpush2.msra.mxu0 0.0
    %100 = vmatprep.mubr.f32.mxu0 0.0
    %101 = vmatmul.mubr.f32.gmra.mxu0 %v27
    %v102 = vpop.f32.mrf.mxu0
    %v103 = vadd.f32 %v23, %v102
    %v104 = vpop.f32.mrf.mxu0
    %105 = vmatprep.mubr.f32.mxu0 0.0
    %106 = vmatmul.mubr.f32.gmra.mxu0 %v30
    %v107 = vpop.f32.mrf.mxu0
    %v108 = vadd.f32 %v23, %v107
    %v109 = vpop.f32.mrf.mxu0
    %110 = vdwg.mxu0
    %111 = vst [vmem:[#allocation2] sm:$0xff] %v103
    %112 = vst [vmem:[#allocation2 + $0x8] sm:$0xff] %v108
    // Predicated region
    $region14: #{tpu_custom_call.1} parent=1 // pred_check
      _
    $region15: #{tpu_custom_call.1} parent=1 // pred_check_branch
      %114 = sbr.rel (0) target = $region17
    $region16: #{tpu_custom_call.1} parent=1 // pred_region
      %s116 = ssub.s32 256, 256
      %117 = vsyncadd [#allocation3], %s116
      %s118 = sshll.u32 [#allocation2], 4
      %s119 = int_to_ptr.vmem [resolvable:$true] %s118
      %124 = dma.vmem_to_hbm [thread:$0]  %s119, 256, %s3, [#allocation3], 128, 128, 8
    $region17: #{tpu_custom_call.1} parent=1 // pred_fallthru
      _
    // Predicated region
    $region18: #{tpu_custom_call.1} parent=1 // pred_check
      _
    $region19: #{tpu_custom_call.1} parent=1 // pred_check_branch
      %126 = sbr.rel (0) target = $region21
    $region20: #{tpu_custom_call.1} parent=1 // pred_region
      %127 = dma.done [#allocation3], 256
    $region21: #{tpu_custom_call.1} parent=1 // pred_fallthru
      _
    %128 = vsyncpa [#allocation3], 1

// kernel: tpu_custom_call.1
$region0: #{tpu_custom_call.1}
  #allocation0 [shape = 'u32[]', space=smem, size = 0x4, offset = 0x4, fixed_abs, tag = 'smem constant byte address 0x4 - core index']
  #allocation1 [shape = 'u32[144,128]{1,0:T(1,128)}', space=vmem, size = 0x12000, scoped, tag = 'internal scratch']
  %s0 = inlined_call_operand.vmem [shape: f32[16,4], index: 0, kind: input, shape index: {}]
  %s1 = inlined_call_operand.vmem [shape: f32[4,128], index: 1, kind: input, shape index: {}]
  %s2 = inlined_call_operand.vmem [shape: f32[1,128], index: 2, kind: input, shape index: {}]
  %s3 = inlined_call_operand.hbm [shape: f32[16,128], index: 3, kind: output, shape index: {}]
  %s4 = sld [smem:[#allocation0]]
  $region22: #{tpu_custom_call.1} parent=0
    _
  %s6 = ssub.s32 1, %s4
  %s7 = scalar_select 0, %s6, %s4
  $region1: #{tpu_custom_call.1} parent=0
    #allocation2 [shape = 'u8[8192]{0}', space=vmem, size = 0x2000, scoped, tag = 'output window, operand 0, single buffered']
    #allocation3 [shape = 's32[1]{0}', space=sflag, size = 0x4, scoped, tag = 'scoped memory for tpu_custom_call.1']
    %8 = vsyncpa [#allocation3], 0
    // Predicated region
    $region2: #{tpu_custom_call.1} parent=1 // pred_check
      _
    $region3: #{tpu_custom_call.1} parent=1 // pred_check_branch
      %10 = sbr.rel (0) target = $region5
    $region4: #{tpu_custom_call.1} parent=1 // pred_region
      _
    $region5: #{tpu_custom_call.1} parent=1 // pred_fallthru
      _
    // Predicated region
    $region6: #{tpu_custom_call.1} parent=1 // pred_check
      _
    $region7: #{tpu_custom_call.1} parent=1 // pred_check_branch
      %12 = sbr.rel (0) target = $region9
    $region8: #{tpu_custom_call.1} parent=1 // pred_region
      _
    $region9: #{tpu_custom_call.1} parent=1 // pred_fallthru
      _
    // Predicated region
    $region10: #{tpu_custom_call.1} parent=1 // pred_check
      _
    $region11: #{tpu_custom_call.1} parent=1 // pred_check_branch
      %14 = sbr.rel (0) target = $region13
    $region12: #{tpu_custom_call.1} parent=1 // pred_region
      _
    $region13: #{tpu_custom_call.1} parent=1 // pred_fallthru
      _
    %v15 = vld [vmem:[%s0] sm:$0xff]
    %v16 = vld [vmem:[%s0 + $0x8] sm:$0xff]
    %v17 = vld [vmem:[%s1] sm:$0xf]
    %v18 = vld [vmem:[%s2] sm:$0x1]
    %v20 = vlaneseq
    %v21 = vshrl.u32 %v20, 7
    %v22 = vsub.s32 0, %v21
    %v23 = vrot.slane %v18, %v22
    %vm25 = vcmask 31744
    %v27 = vsel %vm25, %v15, 0
    %v30 = vsel %vm25, %v16, 0
    %vm32 = vcmask 1043456
    %v34 = vsel %vm32, %v17, 0
    %36 = vmatprep.subr.mxu0 0.0
    %37 = vmatpush1.msra.mxu0 0.0
    %38 = vmatprep.subr.mxu0 0.0
    %39 = vmatpush1.msra.mxu0 0.0
    %40 = vmatprep.subr.mxu0 0.0
    %41 = vmatpush1.msra.mxu0 0.0
    %42 = vmatprep.subr.mxu0 0.0
    %43 = vmatpush1.msra.mxu0 0.0
    %44 = vmatprep.subr.mxu0 0.0
    %45 = vmatpush1.msra.mxu0 0.0
    %46 = vmatprep.subr.mxu0 0.0
    %47 = vmatpush1.msra.mxu0 0.0
    %48 = vmatprep.subr.mxu0 0.0
    %49 = vmatpush1.msra.mxu0 0.0
    %50 = vmatprep.subr.mxu0 0.0
    %51 = vmatpush1.msra.mxu0 0.0
    %52 = vmatprep.subr.mxu0 0.0
    %53 = vmatpush1.msra.mxu0 0.0
    %54 = vmatprep.subr.mxu0 0.0
    %55 = vmatpush1.msra.mxu0 0.0
    %56 = vmatprep.subr.mxu0 0.0
    %57 = vmatpush1.msra.mxu0 0.0
    %58 = vmatprep.subr.mxu0 0.0
    %59 = vmatpush1.msra.mxu0 0.0
    %60 = vmatprep.subr.mxu0 0.0
    %61 = vmatpush1.msra.mxu0 0.0
    %62 = vmatprep.subr.mxu0 0.0
    %63 = vmatpush1.msra.mxu0 0.0
    %64 = vmatprep.subr.mxu0 0.0
    %65 = vmatpush1.msra.mxu0 0.0
    %66 = vmatprep.subr.mxu0 0.0
    %67 = vmatpush1.msra.mxu0 %v34
    %68 = vmatprep.subr.mxu0 0.0
    %69 = vmatpush2.msra.mxu0 0.0
    %70 = vmatprep.subr.mxu0 0.0
    %71 = vmatpush2.msra.mxu0 0.0
    %72 = vmatprep.subr.mxu0 0.0
    %73 = vmatpush2.msra.mxu0 0.0
    %74 = vmatprep.subr.mxu0 0.0
    %75 = vmatpush2.msra.mxu0 0.0
    %76 = vmatprep.subr.mxu0 0.0
    %77 = vmatpush2.msra.mxu0 0.0
    %78 = vmatprep.subr.mxu0 0.0
    %79 = vmatpush2.msra.mxu0 0.0
    %80 = vmatprep.subr.mxu0 0.0
    %81 = vmatpush2.msra.mxu0 0.0
    %82 = vmatprep.subr.mxu0 0.0
    %83 = vmatpush2.msra.mxu0 0.0
    %84 = vmatprep.subr.mxu0 0.0
    %85 = vmatpush2.msra.mxu0 0.0
    %86 = vmatprep.subr.mxu0 0.0
    %87 = vmatpush2.msra.mxu0 0.0
    %88 = vmatprep.subr.mxu0 0.0
    %89 = vmatpush2.msra.mxu0 0.0
    %90 = vmatprep.subr.mxu0 0.0
    %91 = vmatpush2.msra.mxu0 0.0
    %92 = vmatprep.subr.mxu0 0.0
    %93 = vmatpush2.msra.mxu0 0.0
    %94 = vmatprep.subr.mxu0 0.0
    %95 = vmatpush2.msra.mxu0 0.0
    %96 = vmatprep.subr.mxu0 0.0
    %97 = vmatpush2.msra.mxu0 0.0
    %98 = vmatprep.subr.mxu0 0.0
    %99 = vmatpush2.msra.mxu0 0.0
    %100 = vmatprep.mubr.f32.mxu0 0.0
    %101 = vmatmul.mubr.f32.gmra.mxu0 %v27
    %v102 = vpop.f32.mrf.mxu0
    %v103 = vadd.f32 %v23, %v102
    %v104 = vpop.f32.mrf.mxu0
    %105 = vmatprep.mubr.f32.mxu0 0.0
    %106 = vmatmul.mubr.f32.gmra.mxu0 %v30
    %v107 = vpop.f32.mrf.mxu0
    %v108 = vadd.f32 %v23, %v107
    %v109 = vpop.f32.mrf.mxu0
    %110 = vdwg.mxu0
    %111 = vst [vmem:[#allocation2] sm:$0xff] %v103
    %112 = vst [vmem:[#allocation2 + $0x8] sm:$0xff] %v108
    // Predicated region
    $region14: #{tpu_custom_call.1} parent=1 // pred_check
      _
    $region15: #{tpu_custom_call.1} parent=1 // pred_check_branch
      %114 = sbr.rel (0) target = $region17
    $region16: #{tpu_custom_call.1} parent=1 // pred_region
      %s116 = ssub.s32 256, 256
      %117 = vsyncadd [#allocation3], %s116
      %s118 = sshll.u32 [#allocation2], 4
      %s119 = int_to_ptr.vmem [resolvable:$true] %s118
      %124 = dma.vmem_to_hbm [thread:$0]  %s119, 256, %s3, [#allocation3], 128, 128, 8
    $region17: #{tpu_custom_call.1} parent=1 // pred_fallthru
      _
    // Predicated region
    $region18: #{tpu_custom_call.1} parent=1 // pred_check
      _
    $region19: #{tpu_custom_call.1} parent=1 // pred_check_branch
      %126 = sbr.rel (0) target = $region21
    $region20: #{tpu_custom_call.1} parent=1 // pred_region
      %127 = dma.done [#allocation3], 256
    $region21: #{tpu_custom_call.1} parent=1 // pred_fallthru
      _
    %128 = vsyncpa [#allocation3], 1

</llo_original>
